<compile_context>
chip_gen: v5e
topology: v5e:2x2
jax: 0.10.0
libtpu: 0.0.40
codegen_flags: <defaults>
</compile_context>

<pallas_src>
import jax
import jax.numpy as jnp
from jax.experimental import pallas as pl
from jax.experimental.pallas import tpu as pltpu


def _make_ce_kernel(num_classes, mask_cols):
    """Cross-entropy kernel over a (batch-tile, class-tile) grid."""

    def kernel(logits_ref, labels_ref, out_ref, m_sc, l_sc, p_sc):
        ci = pl.program_id(1)
        last_c = pl.num_programs(1) - 1

        @pl.when(ci == 0)
        def _init():
            m_sc[...] = jnp.full(m_sc.shape, -jnp.inf, m_sc.dtype)
            l_sc[...] = jnp.zeros_like(l_sc)
            p_sc[...] = jnp.zeros_like(p_sc)

        x = logits_ref[...].astype(jnp.float32)        # (tile_n, tile_c) f32
        tn, tc = x.shape

        # Tile-local lane ids (row-constant pattern, no per-element offset add).
        lane_ids = jax.lax.broadcasted_iota(jnp.int32, (tn, tc), 1)
        # Shift the label instead of the iota: (tn, 1) int op.
        labels_local = labels_ref[...] - ci * tc       # (tile_n, 1) int32

        # Gather the label logit via a one-hot masked sum; exactly one C tile
        # contains each row's label, and labels < num_classes never hit padded
        # columns, so the pick uses the unmasked tile.
        p_sc[...] += jnp.sum(
            jnp.where(lane_ids == labels_local, x, 0.0), axis=-1, keepdims=True
        )

        def lse_update(xv):
            # Online (flash-style) logsumexp accumulation in f32.
            m_prev = m_sc[...]
            m_new = jnp.maximum(m_prev, jnp.max(xv, axis=-1, keepdims=True))
            l_sc[...] = l_sc[...] * jnp.exp(m_prev - m_new) + jnp.sum(
                jnp.exp(xv - m_new), axis=-1, keepdims=True
            )
            m_sc[...] = m_new

        if mask_cols:
            # Only the LAST class tile can extend past num_classes; keep the
            # compare+select off the hot path of every other tile.
            @pl.when(ci != last_c)
            def _full_tile():
                lse_update(x)

            @pl.when(ci == last_c)
            def _edge_tile():
                valid_cols = num_classes - ci * tc     # scalar bound
                lse_update(jnp.where(lane_ids < valid_cols, x, -jnp.inf))
        else:
            lse_update(x)

        @pl.when(ci == last_c)
        def _finalize():
            # per-example loss = logsumexp(logits) - logit[label]
            out_ref[...] = m_sc[...] + jnp.log(l_sc[...]) - p_sc[...]

    return kernel


def _vmem_capacity_bytes():
    """Physical VMEM of the local chip; conservative (v7x-sized) fallback."""
    try:
        cap = getattr(pltpu.get_tpu_info(), "vmem_capacity_bytes", None)
        if cap:
            return int(cap)
    except Exception:
        pass
    return 64 * 1024 * 1024


def _choose_tiles(n, c, itemsize, vmem_capacity):
    """Pick (tile_n, tile_c) satisfying TPU tiling rules, sized per-generation."""
    sub = 16 if itemsize <= 2 else 8          # sublane multiple (bf16 packs 2/row)
    big_vmem = vmem_capacity >= 96 * 1024 * 1024   # v5e/v6e: 128 MiB; v7x: 64 MiB

    # Class (lane) axis: keep whole if modest, otherwise prefer a 128-multiple
    # that divides C exactly (so the masked last-tile path never exists).
    lane_cap = 4096 if big_vmem else 2048
    if c <= lane_cap:
        tile_c = c
    else:
        tile_c = lane_cap
        for cand in range(lane_cap, 511, -128):
            if c % cand == 0:
                tile_c = cand
                break

    # Batch axis: ~4 MiB native-dtype per block on 128 MiB parts, ~2 MiB on
    # 64 MiB parts; amortizes per-step overhead while leaving pipeline headroom.
    target_bytes = (4 if big_vmem else 2) * 1024 * 1024
    target_rows = max(sub, (target_bytes // (tile_c * itemsize)) // sub * sub)
    tile_n = n if n <= target_rows else target_rows

    # Megacore (v7x): guarantee >= 2 batch tiles whenever the batch allows it,
    # so the "parallel" axis can be sharded across both TensorCores.
    if tile_n >= n and n >= 2 * sub:
        half = -(-n // 2)                      # ceil(n/2)
        half = -(-half // sub) * sub           # round up to sublane multiple
        if half < n:
            tile_n = half

    return tile_n, tile_c, sub


def classification_loss(logits, labels, *, tile_n=None, tile_c=None):
    """logits: (N, C) float array, labels: (N,) int array -> scalar f32 loss."""
    n, c = logits.shape
    itemsize = jnp.dtype(logits.dtype).itemsize
    vmem_capacity = _vmem_capacity_bytes()

    auto_tn, auto_tc, sub = _choose_tiles(n, c, itemsize, vmem_capacity)
    tile_n = auto_tn if tile_n is None else min(int(tile_n), n)
    tile_c = auto_tc if tile_c is None else min(int(tile_c), c)
    if tile_n < n:
        assert tile_n % sub == 0, (
            f"tile_n must be a multiple of {sub} for this dtype (or cover N)")
    if tile_c < c:
        assert tile_c % 128 == 0, "tile_c must be a multiple of 128 (or cover C)"

    labels2d = labels.astype(jnp.int32).reshape(n, 1)

    n_tiles = pl.cdiv(n, tile_n)
    c_tiles = pl.cdiv(c, tile_c)
    mask_cols = (c % tile_c) != 0

    # VMEM budget from the real footprint (+25% margin), no artificial up-clamp:
    # double-buffered native-dtype logits block, ~6 block-sized f32/i32
    # temporaries (x cast, exp, iota, eq/lt, select), small label/out/LSE state.
    block_elems = tile_n * tile_c
    vmem_need = (2 * block_elems * itemsize
                 + 6 * block_elems * 4
                 + 16 * tile_n * 4
                 + (2 << 20))
    vmem_limit = int(min(vmem_need * 5 // 4, int(vmem_capacity * 0.85)))
    vmem_limit = max(vmem_limit, 8 * 1024 * 1024)

    kernel = _make_ce_kernel(c, mask_cols)

    per_example = pl.pallas_call(
        kernel,
        out_shape=jax.ShapeDtypeStruct((n, 1), jnp.float32),
        grid_spec=pltpu.PrefetchScalarGridSpec(
            num_scalar_prefetch=0,
            grid=(n_tiles, c_tiles),
            in_specs=[
                # logits streamed in native dtype, tiled over (N, C)
                pl.BlockSpec((tile_n, tile_c), lambda i, j: (i, j)),
                # labels: same (tile_n, 1) block for every C step
                pl.BlockSpec((tile_n, 1), lambda i, j: (i, 0)),
            ],
            out_specs=pl.BlockSpec((tile_n, 1), lambda i, j: (i, 0)),
            scratch_shapes=[
                pltpu.VMEM((tile_n, 1), jnp.float32),  # running max
                pltpu.VMEM((tile_n, 1), jnp.float32),  # running sum-exp
                pltpu.VMEM((tile_n, 1), jnp.float32),  # picked label logit
            ],
        ),
        compiler_params=pltpu.CompilerParams(
            dimension_semantics=("parallel", "arbitrary"),
            vmem_limit_bytes=vmem_limit,
        ),
    )(logits, labels2d)

    # Mean reduction over the true batch size (tiny (N, 1) output).
    return jnp.mean(per_example)


if __name__ == "__main__":
    key = jax.random.PRNGKey(0)
    k1, k2, k3, k4, k5, k6 = jax.random.split(key, 6)

    def reference(lg, lb):
        logp = jax.nn.log_softmax(lg.astype(jnp.float32), axis=-1)
        return -jnp.mean(logp[jnp.arange(lg.shape[0]), lb])

    # Case 1: tiny single-tile case (matches the module's toy usage).
    N, C = 8, 32
    logits = jax.random.normal(k1, (N, C), dtype=jnp.float32)
    labels = jax.random.randint(k2, (N,), 0, C, dtype=jnp.int32)
    loss = classification_loss(logits, labels)
    jax.block_until_ready(loss)
    ref = reference(logits, labels)
    assert jnp.allclose(loss, ref, atol=1e-4, rtol=1e-4), (loss, ref)

    # Case 2: multi-tile — partial batch tile + partial (masked) last class tile.
    N2, C2 = 200, 320
    logits2 = jax.random.normal(k3, (N2, C2), dtype=jnp.float32)
    labels2 = jax.random.randint(k4, (N2,), 0, C2, dtype=jnp.int32)
    loss2 = classification_loss(logits2, labels2, tile_n=128, tile_c=128)
    jax.block_until_ready(loss2)
    ref2 = reference(logits2, labels2)
    assert jnp.allclose(loss2, ref2, atol=1e-4, rtol=1e-4), (loss2, ref2)

    # Case 3: bf16 logits streamed in native dtype (auto tiling splits the
    # batch into two tiles so both v7x TensorCores would be used).
    N3, C3 = 64, 256
    logits3 = jax.random.normal(k5, (N3, C3), dtype=jnp.float32).astype(jnp.bfloat16)
    labels3 = jax.random.randint(k6, (N3,), 0, C3, dtype=jnp.int32)
    loss3 = classification_loss(logits3, labels3)
    jax.block_until_ready(loss3)
    ref3 = reference(logits3, labels3)
    assert jnp.allclose(loss3, ref3, atol=1e-4, rtol=1e-4), (loss3, ref3)

    print("KERNEL_OK")
</pallas_src>

<mosaic_0001>
module attributes {stable_mosaic.version = 11 : i64} {
  func.func @kernel(%arg0: i32, %arg1: i32, %arg2: memref<8x32xf32, #tpu.memory_space<vmem>>, %arg3: memref<8x1xi32, #tpu.memory_space<vmem>>, %arg4: memref<8x1xf32, #tpu.memory_space<vmem>>, %arg5: memref<8x1xf32, #tpu.memory_space<vmem>>, %arg6: memref<8x1xf32, #tpu.memory_space<vmem>>, %arg7: memref<8x1xf32, #tpu.memory_space<vmem>>) attributes {dimension_semantics = [#tpu.dimension_semantics<parallel>, #tpu.dimension_semantics<arbitrary>], iteration_bounds = array<i64: 1, 1>, scalar_prefetch = 0 : i64, scratch_operands = 3 : i64, tpu.core_type = #tpu.core_type<tc>, window_params = [{transform_indices = @transform_0, window_bounds = array<i64: 8, 32>}, {transform_indices = @transform_1, window_bounds = array<i64: 8, 1>}, {transform_indices = @transform_2, window_bounds = array<i64: 8, 1>}]} {
    %c0_i32 = arith.constant 0 : i32
    %0 = arith.cmpi eq, %arg1, %c0_i32 : i32
    %1 = arith.extui %0 : i1 to i32
    %c0_i32_0 = arith.constant 0 : i32
    %2 = arith.cmpi ne, %1, %c0_i32_0 : i32
    scf.if %2 {
      %cst_21 = arith.constant 0xFF800000 : f32
      %37 = vector.broadcast %cst_21 : f32 to vector<8x1xf32>
      %c0_22 = arith.constant 0 : index
      %c0_23 = arith.constant 0 : index
      %38 = vector.load %arg5[%c0_22, %c0_23] : memref<8x1xf32, #tpu.memory_space<vmem>>, vector<8x1xf32>
      tpu.vector_store %arg5[%c0_22, %c0_23], %37 {strides = array<i32>} : memref<8x1xf32, #tpu.memory_space<vmem>>, vector<8x1xf32>,
      %cst_24 = arith.constant 0.000000e+00 : f32
      %39 = vector.broadcast %cst_24 : f32 to vector<8x1xf32>
      %c0_25 = arith.constant 0 : index
      %c0_26 = arith.constant 0 : index
      %40 = vector.load %arg6[%c0_25, %c0_26] : memref<8x1xf32, #tpu.memory_space<vmem>>, vector<8x1xf32>
      tpu.vector_store %arg6[%c0_25, %c0_26], %39 {strides = array<i32>} : memref<8x1xf32, #tpu.memory_space<vmem>>, vector<8x1xf32>,
      %cst_27 = arith.constant 0.000000e+00 : f32
      %41 = vector.broadcast %cst_27 : f32 to vector<8x1xf32>
      %c0_28 = arith.constant 0 : index
      %c0_29 = arith.constant 0 : index
      %42 = vector.load %arg7[%c0_28, %c0_29] : memref<8x1xf32, #tpu.memory_space<vmem>>, vector<8x1xf32>
      tpu.vector_store %arg7[%c0_28, %c0_29], %41 {strides = array<i32>} : memref<8x1xf32, #tpu.memory_space<vmem>>, vector<8x1xf32>,
    } else {
    }
    %c0 = arith.constant 0 : index
    %c0_1 = arith.constant 0 : index
    %3 = vector.load %arg2[%c0, %c0_1] : memref<8x32xf32, #tpu.memory_space<vmem>>, vector<8x32xf32>
    %4 = tpu.iota {dimensions = array<i32: 1>} : vector<8x32xi32>
    %c0_2 = arith.constant 0 : index
    %c0_3 = arith.constant 0 : index
    %5 = vector.load %arg3[%c0_2, %c0_3] : memref<8x1xi32, #tpu.memory_space<vmem>>, vector<8x1xi32>
    %c32_i32 = arith.constant 32 : i32
    %6 = arith.muli %arg1, %c32_i32 : i32
    %7 = vector.broadcast %6 : i32 to vector<8x1xi32>
    %8 = arith.subi %5, %7 : vector<8x1xi32>
    %c0_4 = arith.constant 0 : index
    %c0_5 = arith.constant 0 : index
    %9 = vector.load %arg7[%c0_4, %c0_5] : memref<8x1xf32, #tpu.memory_space<vmem>>, vector<8x1xf32>
    %10 = vector.broadcast %8 : vector<8x1xi32> to vector<8x32xi32>
    %11 = arith.cmpi eq, %4, %10 : vector<8x32xi32>
    %cst = arith.constant 0.000000e+00 : f32
    %12 = vector.broadcast %cst : f32 to vector<8x32xf32>
    %13 = arith.select %11, %3, %12 : vector<8x32xi1>, vector<8x32xf32>
    %cst_6 = arith.constant dense<0.000000e+00> : vector<8xf32>
    %14 = vector.multi_reduction <add>, %13, %cst_6 [1] : vector<8x32xf32> to vector<8xf32>
    %15 = vector.shape_cast %14 : vector<8xf32> to vector<8x1xf32>
    %16 = arith.addf %9, %15 : vector<8x1xf32>
    %c0_7 = arith.constant 0 : index
    %c0_8 = arith.constant 0 : index
    %17 = vector.load %arg7[%c0_7, %c0_8] : memref<8x1xf32, #tpu.memory_space<vmem>>, vector<8x1xf32>
    tpu.vector_store %arg7[%c0_7, %c0_8], %16 {strides = array<i32>} : memref<8x1xf32, #tpu.memory_space<vmem>>, vector<8x1xf32>,
    %c0_9 = arith.constant 0 : index
    %c0_10 = arith.constant 0 : index
    %18 = vector.load %arg5[%c0_9, %c0_10] : memref<8x1xf32, #tpu.memory_space<vmem>>, vector<8x1xf32>
    %cst_11 = arith.constant dense<0xFF800000> : vector<8xf32>
    %19 = vector.multi_reduction <maximumf>, %3, %cst_11 [1] : vector<8x32xf32> to vector<8xf32>
    %20 = vector.shape_cast %19 : vector<8xf32> to vector<8x1xf32>
    %21 = arith.maximumf %18, %20 : vector<8x1xf32>
    %c0_12 = arith.constant 0 : index
    %c0_13 = arith.constant 0 : index
    %22 = vector.load %arg6[%c0_12, %c0_13] : memref<8x1xf32, #tpu.memory_space<vmem>>, vector<8x1xf32>
    %23 = arith.subf %18, %21 : vector<8x1xf32>
    %24 = math.exp %23 : vector<8x1xf32>
    %25 = arith.mulf %22, %24 : vector<8x1xf32>
    %26 = vector.broadcast %21 : vector<8x1xf32> to vector<8x32xf32>
    %27 = arith.subf %3, %26 : vector<8x32xf32>
    %28 = math.exp %27 : vector<8x32xf32>
    %cst_14 = arith.constant dense<0.000000e+00> : vector<8xf32>
    %29 = vector.multi_reduction <add>, %28, %cst_14 [1] : vector<8x32xf32> to vector<8xf32>
    %30 = vector.shape_cast %29 : vector<8xf32> to vector<8x1xf32>
    %31 = arith.addf %25, %30 : vector<8x1xf32>
    %c0_15 = arith.constant 0 : index
    %c0_16 = arith.constant 0 : index
    %32 = vector.load %arg6[%c0_15, %c0_16] : memref<8x1xf32, #tpu.memory_space<vmem>>, vector<8x1xf32>
    tpu.vector_store %arg6[%c0_15, %c0_16], %31 {strides = array<i32>} : memref<8x1xf32, #tpu.memory_space<vmem>>, vector<8x1xf32>,
    %c0_17 = arith.constant 0 : index
    %c0_18 = arith.constant 0 : index
    %33 = vector.load %arg5[%c0_17, %c0_18] : memref<8x1xf32, #tpu.memory_space<vmem>>, vector<8x1xf32>
    tpu.vector_store %arg5[%c0_17, %c0_18], %21 {strides = array<i32>} : memref<8x1xf32, #tpu.memory_space<vmem>>, vector<8x1xf32>,
    %c0_i32_19 = arith.constant 0 : i32
    %34 = arith.cmpi eq, %arg1, %c0_i32_19 : i32
    %35 = arith.extui %34 : i1 to i32
    %c0_i32_20 = arith.constant 0 : i32
    %36 = arith.cmpi ne, %35, %c0_i32_20 : i32
    scf.if %36 {
      %c0_21 = arith.constant 0 : index
      %c0_22 = arith.constant 0 : index
      %37 = vector.load %arg5[%c0_21, %c0_22] : memref<8x1xf32, #tpu.memory_space<vmem>>, vector<8x1xf32>
      %c0_23 = arith.constant 0 : index
      %c0_24 = arith.constant 0 : index
      %38 = vector.load %arg6[%c0_23, %c0_24] : memref<8x1xf32, #tpu.memory_space<vmem>>, vector<8x1xf32>
      %39 = math.log %38 : vector<8x1xf32>
      %40 = arith.addf %37, %39 : vector<8x1xf32>
      %c0_25 = arith.constant 0 : index
      %c0_26 = arith.constant 0 : index
      %41 = vector.load %arg7[%c0_25, %c0_26] : memref<8x1xf32, #tpu.memory_space<vmem>>, vector<8x1xf32>
      %42 = arith.subf %40, %41 : vector<8x1xf32>
      %c0_27 = arith.constant 0 : index
      %c0_28 = arith.constant 0 : index
      %43 = vector.load %arg4[%c0_27, %c0_28] : memref<8x1xf32, #tpu.memory_space<vmem>>, vector<8x1xf32>
      tpu.vector_store %arg4[%c0_27, %c0_28], %42 {strides = array<i32>} : memref<8x1xf32, #tpu.memory_space<vmem>>, vector<8x1xf32>,
    } else {
    }
    return
  }
  func.func @transform_0(%arg0: i32, %arg1: i32) -> (i32, i32) {
    %c0_i32 = arith.constant 0 : i32
    return %arg0, %arg1 : i32, i32
  }
  func.func @transform_1(%arg0: i32, %arg1: i32) -> (i32, i32) {
    %c0_i32 = arith.constant 0 : i32
    %c0_i32_0 = arith.constant 0 : i32
    return %arg0, %c0_i32 : i32, i32
  }
  func.func @transform_2(%arg0: i32, %arg1: i32) -> (i32, i32) {
    %c0_i32 = arith.constant 0 : i32
    %c0_i32_0 = arith.constant 0 : i32
    return %arg0, %c0_i32 : i32, i32
  }
}

</mosaic_0001>

<llo_original>
// kernel: tpu_custom_call.1
$region0: #{tpu_custom_call.1}
  #allocation0 [shape = 'u32[]', space=smem, size = 0x4, offset = 0x4, fixed_abs, tag = 'smem constant byte address 0x4 - core index']
  #allocation1 [shape = 'u32[72,128]{1,0:T(1,128)}', space=vmem, size = 0x9000, scoped, tag = 'internal scratch']
  #allocation2 [shape = 'f32[8,1]{1,0:T(8,128)}', space=vmem, size = 0x1000, scoped, tag = 'scratch operand']
  #allocation3 [shape = 'f32[8,1]{1,0:T(8,128)}', space=vmem, size = 0x1000, scoped, tag = 'scratch operand']
  #allocation4 [shape = 'f32[8,1]{1,0:T(8,128)}', space=vmem, size = 0x1000, scoped, tag = 'scratch operand']
  %s0 = inlined_call_operand.vmem [shape: f32[8,32], index: 0, kind: input, shape index: {}]
  %s1 = inlined_call_operand.vmem [shape: s32[8,1], index: 1, kind: input, shape index: {}]
  %s2 = inlined_call_operand.vmem [shape: f32[8,1], index: 2, kind: output, shape index: {}]
  %s3 = sld [smem:[#allocation0]]
  $region26: #{tpu_custom_call.1} parent=0
    _
  %s5 = ssub.s32 1, %s3
  %s6 = scalar_select 0, %s5, %s3
  // Predicated region
  $region2: #{tpu_custom_call.1} parent=0 // pred_check
    _
  $region3: #{tpu_custom_call.1} parent=0 // pred_check_branch
    %8 = sbr.rel (0) target = $region5
  $region4: #{tpu_custom_call.1} parent=0 // pred_region
    _
  $region5: #{tpu_custom_call.1} parent=0 // pred_fallthru
    _
  // Predicated region
  $region6: #{tpu_custom_call.1} parent=0 // pred_check
    _
  $region7: #{tpu_custom_call.1} parent=0 // pred_check_branch
    %10 = sbr.rel (0) target = $region9
  $region8: #{tpu_custom_call.1} parent=0 // pred_region
    _
  $region9: #{tpu_custom_call.1} parent=0 // pred_fallthru
    _
  %p11 = scmp.eq.s32.totalorder 0, 0
  // Predicated region
  $region10: #{tpu_custom_call.1} parent=0 // pred_check
    %p12 = pneg %p11
  $region11: #{tpu_custom_call.1} parent=0 // pred_check_branch
    %14 = sbr.rel (%p12) target = $region13
  $region12: #{tpu_custom_call.1} parent=0 // pred_region
    %vm15 = vcmask 7168
    %16 = vst.msk [vmem:[#allocation2] sm:$0xff] %vm15, -inf
    %17 = vst.msk [vmem:[#allocation3] sm:$0xff] %vm15, 0.0
    %18 = vst.msk [vmem:[#allocation4] sm:$0xff] %vm15, 0.0
  $region13: #{tpu_custom_call.1} parent=0 // pred_fallthru
    _
  %v19 = vld [vmem:[%s0] sm:$0xff]
  %v20 = vlaneseq
  %v21 = vand.u32 %v20, 127
  %v22 = vld [vmem:[%s1] sm:$0xff]
  %s23 = smul.u32 0, 32
  %v24 = vstv %s23
  %v25 = vsub.s32 %v22, %v24
  %v26 = vld [vmem:[#allocation4] sm:$0xff]
  %27 = vset.pattern.permute.xlu0 0
  %28 = vperm.xlu0 %27, %v25
  %v29 = vpop.permute.xlu0 %28
  %vm30 = vcmp.eq.s32.totalorder %v21, %v29
  %v31 = vsel %vm30, %v19, 0.0
  %vm32 = vcmask 261120
  %v33 = vsel %vm32, %v31, 0.0
  %34 = vadd.xlane.f32.xlu0 %v33
  %v35 = vpop.xlane.xlu0 %34
  %v36 = vadd.f32 %v26, %v35
  %vm37 = vcmask 7168
  %38 = vst.msk [vmem:[#allocation4] sm:$0xff] %vm37, %v36
  %v39 = vld [vmem:[#allocation2] sm:$0xff]
  %v40 = vsel %vm32, %v19, -inf
  %41 = vmax.xlane.f32.xlu0 %v40
  %v42 = vpop.xlane.xlu0 %41
  %v43 = vmax.f32 %v39, %v42
  %v44 = vld [vmem:[#allocation3] sm:$0xff]
  %v45 = vsub.f32 %v39, %v43
  %v46 = vmul.f32 %v45, 1.442695
  %v47 = vpow.pop %v46
  %v48 = vmul.f32 %v44, %v47
  %50 = vset.pattern.permute.xlu0 0
  %51 = vperm.xlu0 %50, %v43
  %v52 = vpop.permute.xlu0 %51
  %v54 = vsub.f32 %v19, %v52
  %v55 = vmul.f32 %v54, 1.442695
  %v56 = vpow.pop %v55
  %v57 = vsel %vm32, %v56, 0.0
  %58 = vadd.xlane.f32.xlu0 %v57
  %v59 = vpop.xlane.xlu0 %58
  %v60 = vadd.f32 %v48, %v59
  %61 = vst.msk [vmem:[#allocation3] sm:$0xff] %vm37, %v60
  %62 = vst.msk [vmem:[#allocation2] sm:$0xff] %vm37, %v43
  // Predicated region
  $region14: #{tpu_custom_call.1} parent=0 // pred_check
    %p63 = pneg %p11
  $region15: #{tpu_custom_call.1} parent=0 // pred_check_branch
    %65 = sbr.rel (%p63) target = $region17
  $region16: #{tpu_custom_call.1} parent=0 // pred_region
    %v66 = vld [vmem:[#allocation2] sm:$0xff]
    %v67 = vld [vmem:[#allocation3] sm:$0xff]
    %v68 = vlog2.pop %v67
    %v69 = vmul.f32 %v68, 0.6931472
    %v70 = vadd.f32 %v66, %v69
    %v71 = vld [vmem:[#allocation4] sm:$0xff]
    %v72 = vsub.f32 %v70, %v71
    %73 = vst.msk [vmem:[%s2] sm:$0xff] %vm37, %v72
  $region17: #{tpu_custom_call.1} parent=0 // pred_fallthru
    _
  // Predicated region
  $region18: #{tpu_custom_call.1} parent=0 // pred_check
    _
  $region19: #{tpu_custom_call.1} parent=0 // pred_check_branch
    %75 = sbr.rel (0) target = $region21
  $region20: #{tpu_custom_call.1} parent=0 // pred_region
    _
  $region21: #{tpu_custom_call.1} parent=0 // pred_fallthru
    _
  // Predicated region
  $region22: #{tpu_custom_call.1} parent=0 // pred_check
    _
  $region23: #{tpu_custom_call.1} parent=0 // pred_check_branch
    %77 = sbr.rel (0) target = $region25
  $region24: #{tpu_custom_call.1} parent=0 // pred_region
    _
  $region25: #{tpu_custom_call.1} parent=0 // pred_fallthru
    _

</llo_original>
